<compile_context>
chip_gen: v6e
topology: v6e:2x2x1
jax: 0.10.0
libtpu: 0.0.40
codegen_flags: <defaults>
</compile_context>

<pallas_src>
import jax
import jax.numpy as jnp
from jax.experimental import pallas as pl
from jax.experimental.pallas import tpu as pltpu


_MAX_TILE_BYTES = 4 * 1024 * 1024   # per-block footprint; x4 when double-buffered in+out
_VMEM_LIMIT = 32 * 1024 * 1024      # safe on v5e/v6e (128 MiB) and v7x (64 MiB physical)


def _sublane_multiple(itemsize):
    # Native TPU sublane tiling: f32 -> 8, bf16/f16 -> 16, int8/fp8 -> 32.
    return {4: 8, 2: 16, 1: 32}.get(itemsize, 8)


def _custom_activation_kernel(scal_ref, x_ref, o_ref):
    # scal_ref (SMEM f32[3]): [scale = 2*radius*cos(phi), alpha, -beta]
    scale = scal_ref[0]
    alpha = scal_ref[1]
    neg_beta = scal_ref[2]
    x = x_ref[...].astype(jnp.float32)          # in-kernel load cast (f32 compute)
    y = x * scale + jnp.where(x > 0, alpha, neg_beta)
    o_ref[...] = y.astype(o_ref.dtype)          # in-kernel store cast


def custom_activation_d(x, params):
    """Pallas forward of CustomActivationD. `params` holds (1,)-shaped f32 arrays."""
    alpha = params["alpha"].reshape(())
    beta = params["beta"].reshape(())
    theta = params["theta"].reshape(())
    radius = params["radius"].reshape(())
    gamma = params["gamma"].reshape(())
    delta = params["delta"].reshape(())

    phi = (theta + gamma) * delta
    scale = 2.0 * radius * jnp.cos(phi)          # exp(i*phi)*(x+ix): real+imag = 2*cos(phi)*x
    scal = jnp.stack([scale, alpha, -beta]).astype(jnp.float32)

    orig_shape = x.shape
    orig_dtype = x.dtype
    flat = x.reshape(-1)
    n = flat.shape[0]
    itemsize = jnp.dtype(orig_dtype).itemsize
    sub = _sublane_multiple(itemsize)

    # Lane-dense layout: widest lane count (multiple of 128) dividing n -> zero-copy
    # reshape in the common case. Otherwise pad only up to the next lane multiple.
    lanes = None
    for cand in (512, 256, 128):
        if n % cand == 0:
            lanes = cand
            break
    if lanes is None:
        lanes = 512
        n_pad = -(-n // lanes) * lanes
        flat = jnp.pad(flat, (0, n_pad - n))     # < 512 extra elements
    else:
        n_pad = n

    rows = n_pad // lanes
    x2d = flat.reshape(rows, lanes)

    # Tile-row selection: <= ~4 MiB per block, dtype-aligned sublanes, and >= 2 grid
    # steps whenever possible so the parallel axis shards across v7x's two cores.
    if rows <= sub:
        tile_rows = rows                         # single block equal to full dim (allowed)
    else:
        cap = max(sub, (_MAX_TILE_BYTES // (lanes * itemsize)) // sub * sub)
        if rows >= 2 * sub:
            half = max(sub, (pl.cdiv(rows, 2) // sub) * sub)
            cap = min(cap, half)
        tile_rows = min(cap, rows // sub * sub)

    grid = (pl.cdiv(rows, tile_rows),)           # partial last block masked by Pallas

    out2d = pl.pallas_call(
        _custom_activation_kernel,
        out_shape=jax.ShapeDtypeStruct((rows, lanes), orig_dtype),
        grid_spec=pltpu.PrefetchScalarGridSpec(
            num_scalar_prefetch=1,
            grid=grid,
            in_specs=[pl.BlockSpec((tile_rows, lanes), lambda i, s: (i, 0))],
            out_specs=pl.BlockSpec((tile_rows, lanes), lambda i, s: (i, 0)),
        ),
        compiler_params=pltpu.CompilerParams(
            dimension_semantics=("parallel",),
            vmem_limit_bytes=_VMEM_LIMIT,
        ),
    )(scal, x2d)

    out = out2d.reshape(-1)
    if n_pad != n:
        out = out[:n]
    return out.reshape(orig_shape)


def init_params(alpha=0.0, beta=0.0, theta=1.0, radius=0.5, gamma=0.1, delta=0.0):
    # Mirrors CustomActivationD.__init__ : nn.Parameter(torch.FloatTensor([...]))
    return {
        "alpha": jnp.asarray([alpha], jnp.float32),
        "beta": jnp.asarray([beta], jnp.float32),
        "theta": jnp.asarray([theta], jnp.float32),
        "radius": jnp.asarray([radius], jnp.float32),
        "gamma": jnp.asarray([gamma], jnp.float32),
        "delta": jnp.asarray([delta], jnp.float32),
    }


def reference(x, params):
    # Straight transcription of the PyTorch forward (complex math) for verification.
    alpha = params["alpha"].reshape(())
    beta = params["beta"].reshape(())
    theta = params["theta"].reshape(())
    radius = params["radius"].reshape(())
    gamma = params["gamma"].reshape(())
    delta = params["delta"].reshape(())
    phi = (theta + gamma) * delta
    xf = x.astype(jnp.float32)
    z = jax.lax.complex(xf, xf)
    rot = jax.lax.complex(jnp.cos(phi), jnp.sin(phi)) * z
    euler = radius * (jnp.real(rot) + jnp.imag(rot))
    return jnp.where(xf > 0, euler + alpha, euler - beta)


if __name__ == "__main__":
    key = jax.random.PRNGKey(0)

    # 1) Module-shaped input, default parameters (activation is exactly identity).
    x = jax.random.normal(key, (2, 4, 16, 16), jnp.float32)
    p_default = init_params()
    y = jax.block_until_ready(custom_activation_d(x, p_default))
    assert y.shape == x.shape and y.dtype == x.dtype
    assert bool(jnp.all(jnp.isfinite(y)))
    assert bool(jnp.allclose(y, reference(x, p_default), atol=1e-5, rtol=1e-5))

    # 2) Non-default parameters (exercises the 2*radius*cos(phi) folding, alpha/beta).
    p_alt = init_params(alpha=0.3, beta=0.2, theta=0.7, radius=0.8, gamma=0.1, delta=0.5)
    y2 = jax.block_until_ready(custom_activation_d(x, p_alt))
    assert bool(jnp.allclose(y2, reference(x, p_alt), atol=1e-5, rtol=1e-5))

    # 3) bf16 input: exercises in-kernel load/store casts (HBM traffic halved).
    xb = jax.random.normal(jax.random.PRNGKey(1), (8, 64, 64), jnp.bfloat16)
    y3 = jax.block_until_ready(custom_activation_d(xb, p_alt))
    assert y3.dtype == jnp.bfloat16
    ref3 = reference(xb, p_alt).astype(jnp.bfloat16)
    assert bool(jnp.allclose(y3.astype(jnp.float32), ref3.astype(jnp.float32),
                             atol=2e-2, rtol=2e-2))

    # 4) Odd element count: exercises the small-pad fallback path.
    xo = jax.random.normal(jax.random.PRNGKey(2), (3, 5, 7), jnp.float32)
    y4 = jax.block_until_ready(custom_activation_d(xo, p_alt))
    assert y4.shape == xo.shape
    assert bool(jnp.allclose(y4, reference(xo, p_alt), atol=1e-5, rtol=1e-5))

    print("KERNEL_OK")
</pallas_src>

<mosaic_0001>
module attributes {stable_mosaic.version = 11 : i64} {
  func.func @_custom_activation_kernel(%arg0: i32, %arg1: memref<3xf32, #tpu.memory_space<smem>>, %arg2: memref<4x512xf32, #tpu.memory_space<vmem>>, %arg3: memref<4x512xf32, #tpu.memory_space<vmem>>) attributes {dimension_semantics = [#tpu.dimension_semantics<parallel>], iteration_bounds = array<i64: 1>, scalar_prefetch = 1 : i64, scratch_operands = 0 : i64, tpu.core_type = #tpu.core_type<tc>, window_params = [{transform_indices = @transform_0, window_bounds = array<i64: 4, 512>}, {transform_indices = @transform_1, window_bounds = array<i64: 4, 512>}]} {
    %c0 = arith.constant 0 : index
    %0 = memref.load %arg1[%c0] : memref<3xf32, #tpu.memory_space<smem>>
    %c1 = arith.constant 1 : index
    %1 = memref.load %arg1[%c1] : memref<3xf32, #tpu.memory_space<smem>>
    %c2 = arith.constant 2 : index
    %2 = memref.load %arg1[%c2] : memref<3xf32, #tpu.memory_space<smem>>
    %c0_0 = arith.constant 0 : index
    %c0_1 = arith.constant 0 : index
    %3 = vector.load %arg2[%c0_0, %c0_1] : memref<4x512xf32, #tpu.memory_space<vmem>>, vector<4x512xf32>
    %4 = vector.broadcast %0 : f32 to vector<4x512xf32>
    %5 = arith.mulf %3, %4 : vector<4x512xf32>
    %cst = arith.constant 0.000000e+00 : f32
    %6 = vector.broadcast %cst : f32 to vector<4x512xf32>
    %7 = arith.cmpf ogt, %3, %6 : vector<4x512xf32>
    %8 = vector.broadcast %1 : f32 to vector<4x512xf32>
    %9 = vector.broadcast %2 : f32 to vector<4x512xf32>
    %10 = arith.select %7, %8, %9 : vector<4x512xi1>, vector<4x512xf32>
    %11 = arith.addf %5, %10 : vector<4x512xf32>
    %c0_2 = arith.constant 0 : index
    %c0_3 = arith.constant 0 : index
    %12 = vector.load %arg3[%c0_2, %c0_3] : memref<4x512xf32, #tpu.memory_space<vmem>>, vector<4x512xf32>
    tpu.vector_store %arg3[%c0_2, %c0_3], %11 {strides = array<i32>} : memref<4x512xf32, #tpu.memory_space<vmem>>, vector<4x512xf32>,
    return
  }
  func.func @transform_0(%arg0: i32, %arg1: memref<3xf32, #tpu.memory_space<smem>>) -> (i32, i32) {
    %c0_i32 = arith.constant 0 : i32
    %c0_i32_0 = arith.constant 0 : i32
    return %arg0, %c0_i32 : i32, i32
  }
  func.func @transform_1(%arg0: i32, %arg1: memref<3xf32, #tpu.memory_space<smem>>) -> (i32, i32) {
    %c0_i32 = arith.constant 0 : i32
    %c0_i32_0 = arith.constant 0 : i32
    return %arg0, %c0_i32 : i32, i32
  }
}

</mosaic_0001>

<llo_original>
// kernel: tpu_custom_call.1
$region0: #{tpu_custom_call.1}
  #allocation0 [shape = 'u32[]', space=smem, size = 0x4, offset = 0x4, fixed_abs, tag = 'smem constant byte address 0x4 - core index']
  #allocation1 [shape = 'u32[144,128]{1,0:T(1,128)}', space=vmem, size = 0x12000, scoped, tag = 'internal scratch']
  #allocation2 [shape = 's32[1]{0}', space=sflag, size = 0x4, scoped, tag = 'scoped memory for tpu_custom_call.1']
  #allocation3 [shape = 'u8[512]{0}', space=smem, size = 0x200, scoped, tag = 'prefetched SMEM operand 0']
  %s0 = inlined_call_operand.hbm [shape: f32[3], index: 0, kind: input, shape index: {}]
  %s1 = inlined_call_operand.hbm [shape: f32[4,512], index: 1, kind: input, shape index: {}]
  %s2 = inlined_call_operand.hbm [shape: f32[4,512], index: 2, kind: output, shape index: {}]
  %s3 = sld [smem:[#allocation0]]
  $region18: #{tpu_custom_call.1} parent=0
    _
  %s5 = ssub.s32 1, %s3
  %s6 = scalar_select 0, %s5, %s3
  %8 = dma.hbm_to_smem %s0, 16, [#allocation3], [#allocation2]
  %9 = dma.done [#allocation2], 16
  %10 = sfence
  $region1: #{tpu_custom_call.1} parent=0
    #allocation4 [shape = 'u8[8192]{0}', space=vmem, size = 0x2000, scoped, tag = 'input window, operand 1, single buffered']
    #allocation5 [shape = 's32[1]{0}', space=sflag, size = 0x4, scoped, tag = 'scoped memory for tpu_custom_call.1']
    #allocation6 [shape = 's32[1]{0}', space=sflag, size = 0x4, scoped, tag = 'scoped memory for tpu_custom_call.1']
    #allocation7 [shape = 'u8[8192]{0}', space=vmem, size = 0x2000, scoped, tag = 'output window, operand 0, single buffered']
    %11 = vsyncpa [#allocation5], 0
    %12 = vsyncpa [#allocation6], 0
    // Predicated region
    $region2: #{tpu_custom_call.1} parent=1 // pred_check
      _
    $region3: #{tpu_custom_call.1} parent=1 // pred_check_branch
      %14 = sbr.rel (0) target = $region5
    $region4: #{tpu_custom_call.1} parent=1 // pred_region
      %s16 = ssub.s32 256, 256
      %17 = vsyncadd [#allocation5], %s16
      %s19 = sshll.u32 [#allocation4], 4
      %s20 = int_to_ptr.vmem [resolvable:$true] %s19
      %22 = dma.hbm_to_vmem [thread:$0]  %s1, 256, %s20, [#allocation5]
    $region5: #{tpu_custom_call.1} parent=1 // pred_fallthru
      _
    // Predicated region
    $region6: #{tpu_custom_call.1} parent=1 // pred_check
      _
    $region7: #{tpu_custom_call.1} parent=1 // pred_check_branch
      %24 = sbr.rel (0) target = $region9
    $region8: #{tpu_custom_call.1} parent=1 // pred_region
      %25 = dma.done [#allocation5], 256
    $region9: #{tpu_custom_call.1} parent=1 // pred_fallthru
      _
    %s26 = sld [smem:[#allocation3]]
    %s27 = sld [smem:[#allocation3 + $0x1]]
    %s28 = sld [smem:[#allocation3 + $0x2]]
    %v29 = vld [vmem:[#allocation4] sm:$0xff]
    %v30 = vld [vmem:[#allocation4 + $0x8] sm:$0xff]
    %v31 = vstv %s26
    %v32 = vmul.f32 %v29, %v31
    %v33 = vmul.f32 %v30, %v31
    %vm34 = vcmp.gt.f32.partialorder %v29, 0.0
    %vm35 = vcmp.gt.f32.partialorder %v30, 0.0
    %v36 = vstv %s27
    %v37 = vstv %s28
    %v38 = vsel %vm34, %v36, %v37
    %v39 = vsel %vm35, %v36, %v37
    %v40 = vadd.f32 %v32, %v38
    %v41 = vadd.f32 %v33, %v39
    %42 = vst [vmem:[#allocation7] sm:$0xff] %v40
    %43 = vst [vmem:[#allocation7 + $0x8] sm:$0xff] %v41
    // Predicated region
    $region10: #{tpu_custom_call.1} parent=1 // pred_check
      _
    $region11: #{tpu_custom_call.1} parent=1 // pred_check_branch
      %45 = sbr.rel (0) target = $region13
    $region12: #{tpu_custom_call.1} parent=1 // pred_region
      %s47 = ssub.s32 256, 256
      %48 = vsyncadd [#allocation6], %s47
      %s50 = sshll.u32 [#allocation7], 4
      %s51 = int_to_ptr.vmem [resolvable:$true] %s50
      %53 = dma.vmem_to_hbm [thread:$0]  %s51, 256, %s2, [#allocation6]
    $region13: #{tpu_custom_call.1} parent=1 // pred_fallthru
      _
    // Predicated region
    $region14: #{tpu_custom_call.1} parent=1 // pred_check
      _
    $region15: #{tpu_custom_call.1} parent=1 // pred_check_branch
      %55 = sbr.rel (0) target = $region17
    $region16: #{tpu_custom_call.1} parent=1 // pred_region
      %56 = dma.done [#allocation6], 256
    $region17: #{tpu_custom_call.1} parent=1 // pred_fallthru
      _
    %57 = vsyncpa [#allocation5], 1
    %58 = vsyncpa [#allocation6], 1

</llo_original>
